<compile_context>
chip_gen: v5e
topology: v5e:2x2
jax: 0.10.0
libtpu: 0.0.40
codegen_flags: <defaults>
</compile_context>

<pallas_src>
import functools

import jax
import jax.numpy as jnp
from jax.experimental import pallas as pl
from jax.experimental.pallas import tpu as pltpu


def _round_up(x, m):
    return ((x + m - 1) // m) * m


def _cdiv(a, b):
    return -(-a // b)


def _balanced_l1_kernel(attn_ref, seg_ref, out_ref, *, normalize: bool,
                        p_true: float):
    # attn_ref / seg_ref: (R, P) VMEM tiles of flattened (batch*token) rows.
    attn = attn_ref[...].astype(jnp.float32)
    seg = seg_ref[...].astype(jnp.float32)

    a_s = attn * seg                                       # attn * seg
    s_obj = jnp.sum(a_s, axis=-1, keepdims=True)           # sum(attn*seg)
    s_bg = jnp.sum(attn - a_s, axis=-1, keepdims=True)     # sum(attn*(1-seg))
    s_seg = jnp.sum(seg, axis=-1, keepdims=True)           # sum(seg)

    if normalize:
        # Hoist the divide out of the (R, P) domain: scale the per-row sums.
        row_max = jnp.max(attn, axis=-1, keepdims=True)
        inv = 1.0 / (row_max + 1e-5)
        s_obj = s_obj * inv
        s_bg = s_bg * inv

    background_loss = s_bg / (p_true - s_seg + 1e-5)       # sum(1-seg) == P - sum(seg)
    object_loss = s_obj / (s_seg + 1e-5)
    out_ref[...] = (background_loss - object_loss).astype(out_ref.dtype)


def balanced_l1_loss(object_token_attn_prob, object_segmaps,
                     threshold: float = 1.0, normalize: bool = False,
                     block_rows=None):
    """Pallas TPU implementation of BalancedL1Loss.forward.

    Args:
      object_token_attn_prob: (B, T, P) attention probabilities (f32 or bf16).
      object_segmaps:         (B, T, P) object segmentation maps (f32 or bf16).
      threshold: unused in the reference forward pass (kept for API parity).
      normalize: divide each row by its max (+1e-5) before the loss.
      block_rows: rows of the flattened (B*T, P) problem per grid step.
        If None, auto-sized from a VMEM budget (inputs + f32 temporaries)
        while keeping several grid steps for pipelining / megacore.
    Returns:
      (B, T) float32 loss per (batch, token).
    """
    del threshold  # unused in the reference forward pass
    B, T, P = object_token_attn_prob.shape
    assert object_segmaps.shape == (B, T, P)
    N = B * T

    attn = object_token_attn_prob.reshape(N, P)
    seg = object_segmaps.reshape(N, P)

    lanes = _round_up(P, 128)  # VMEM lane layout pads to 128; used for sizing only
    in_itemsize = attn.dtype.itemsize + seg.dtype.itemsize

    if block_rows is None:
        # Per-row VMEM footprint per grid step:
        #   2 double-buffered tiles of each input  -> 2 * in_itemsize bytes/lane
        #   ~4 whole-tile f32 temporaries in the body (attn, seg, attn*seg, diff)
        budget_bytes = 24 * 1024 * 1024
        bytes_per_row = lanes * (2 * in_itemsize + 4 * 4)
        block_rows = max(8, (budget_bytes // bytes_per_row) // 8 * 8)

        # Keep >= target_steps grid steps (pipelining; v7x megacore needs >= 2
        # parallel steps), as long as per-input tiles stay >= ~512 KiB.
        target_steps = 4
        min_rows = max(8, _round_up(
            _cdiv(512 * 1024, lanes * attn.dtype.itemsize), 8))
        rows_for_target = _round_up(_cdiv(N, target_steps), 8)
        block_rows = min(block_rows, max(min_rows, rows_for_target))

    if block_rows >= N:
        block_rows = N                       # single full-extent block (tiny problems)
    else:
        block_rows = max(8, (block_rows // 8) * 8)   # sublane-aligned row blocks

    grid = (_cdiv(N, block_rows),)           # partial final block handled by Pallas

    kernel = functools.partial(_balanced_l1_kernel, normalize=normalize,
                               p_true=float(P))

    out = pl.pallas_call(
        kernel,
        out_shape=jax.ShapeDtypeStruct((N, 1), jnp.float32),
        grid_spec=pltpu.PrefetchScalarGridSpec(
            num_scalar_prefetch=0,
            grid=grid,
            in_specs=[
                # Last dim = full extent P: no host pad, Mosaic masks ragged lanes.
                pl.BlockSpec((block_rows, P), lambda i: (i, 0)),
                pl.BlockSpec((block_rows, P), lambda i: (i, 0)),
            ],
            out_specs=pl.BlockSpec((block_rows, 1), lambda i: (i, 0)),
        ),
        compiler_params=pltpu.CompilerParams(
            dimension_semantics=("parallel",),
            # Explicit limit: > v5e's 16 MiB scoped default, <= v7x's 64 MiB physical.
            vmem_limit_bytes=48 * 1024 * 1024,
        ),
    )(attn, seg)

    return out.reshape(B, T)


def _reference(attn, seg, normalize=False):
    # Pure-JAX reference mirroring the PyTorch module exactly.
    if normalize:
        attn = attn / (jnp.max(attn, axis=2, keepdims=True) + 1e-05)
    background = 1.0 - seg
    background_sum = jnp.sum(background, axis=2) + 1e-05
    object_sum = jnp.sum(seg, axis=2) + 1e-05
    background_loss = jnp.sum(attn * background, axis=2) / background_sum
    object_loss = jnp.sum(attn * seg, axis=2) / object_sum
    return background_loss - object_loss


if __name__ == "__main__":
    key = jax.random.PRNGKey(0)
    k0, k1, k2, k3, k4, k5 = jax.random.split(key, 6)

    # ---- Check 1: batch=2, tokens=8, pixels=16*16 (lane aligned), auto sizing.
    B, T, H, W = 2, 8, 16, 16
    P = H * W
    attn_prob = jax.nn.softmax(
        jax.random.normal(k0, (B, T, P), dtype=jnp.float32), axis=-1)
    segmaps = (jax.random.uniform(k1, (B, T, P)) > 0.5).astype(jnp.float32)

    out = jax.block_until_ready(balanced_l1_loss(attn_prob, segmaps))
    ref = _reference(attn_prob, segmaps)
    assert out.shape == (B, T)
    assert jnp.allclose(out, ref, atol=1e-5, rtol=1e-4), \
        float(jnp.max(jnp.abs(out - ref)))

    # ---- Check 2: normalize=True, ragged P (200, no host pad), 2-step grid.
    B2, T2, P2 = 4, 64, 200
    attn2 = jax.nn.softmax(
        jax.random.normal(k2, (B2, T2, P2), dtype=jnp.float32), axis=-1)
    seg2 = (jax.random.uniform(k3, (B2, T2, P2)) > 0.5).astype(jnp.float32)

    out2 = jax.block_until_ready(
        balanced_l1_loss(attn2, seg2, normalize=True, block_rows=128))
    ref2 = _reference(attn2, seg2, normalize=True)
    assert out2.shape == (B2, T2)
    assert jnp.allclose(out2, ref2, atol=1e-5, rtol=1e-4), \
        float(jnp.max(jnp.abs(out2 - ref2)))

    # ---- Check 3: partial final row block (N=30 not a multiple of 16) and
    # ragged P, with no host-side padding anywhere.
    B3, T3, P3 = 3, 10, 300
    attn3 = jax.nn.softmax(
        jax.random.normal(k4, (B3, T3, P3), dtype=jnp.float32), axis=-1)
    seg3 = (jax.random.uniform(k5, (B3, T3, P3)) > 0.5).astype(jnp.float32)

    out3 = jax.block_until_ready(balanced_l1_loss(attn3, seg3, block_rows=16))
    ref3 = _reference(attn3, seg3)
    assert out3.shape == (B3, T3)
    assert jnp.allclose(out3, ref3, atol=1e-5, rtol=1e-4), \
        float(jnp.max(jnp.abs(out3 - ref3)))

    print("KERNEL_OK")
</pallas_src>

<mosaic_0001>
module attributes {stable_mosaic.version = 11 : i64} {
  func.func @_balanced_l1_kernel(%arg0: i32, %arg1: memref<16x256xf32, #tpu.memory_space<vmem>>, %arg2: memref<16x256xf32, #tpu.memory_space<vmem>>, %arg3: memref<16x1xf32, #tpu.memory_space<vmem>>) attributes {dimension_semantics = [#tpu.dimension_semantics<parallel>], iteration_bounds = array<i64: 1>, scalar_prefetch = 0 : i64, scratch_operands = 0 : i64, tpu.core_type = #tpu.core_type<tc>, window_params = [{transform_indices = @transform_0, window_bounds = array<i64: 16, 256>}, {transform_indices = @transform_1, window_bounds = array<i64: 16, 256>}, {transform_indices = @transform_2, window_bounds = array<i64: 16, 1>}]} {
    %c0 = arith.constant 0 : index
    %c0_0 = arith.constant 0 : index
    %0 = vector.load %arg1[%c0, %c0_0] : memref<16x256xf32, #tpu.memory_space<vmem>>, vector<16x256xf32>
    %c0_1 = arith.constant 0 : index
    %c0_2 = arith.constant 0 : index
    %1 = vector.load %arg2[%c0_1, %c0_2] : memref<16x256xf32, #tpu.memory_space<vmem>>, vector<16x256xf32>
    %2 = arith.mulf %0, %1 : vector<16x256xf32>
    %cst = arith.constant dense<0.000000e+00> : vector<16xf32>
    %3 = vector.multi_reduction <add>, %2, %cst [1] : vector<16x256xf32> to vector<16xf32>
    %4 = vector.shape_cast %3 : vector<16xf32> to vector<16x1xf32>
    %5 = arith.subf %0, %2 : vector<16x256xf32>
    %cst_3 = arith.constant dense<0.000000e+00> : vector<16xf32>
    %6 = vector.multi_reduction <add>, %5, %cst_3 [1] : vector<16x256xf32> to vector<16xf32>
    %7 = vector.shape_cast %6 : vector<16xf32> to vector<16x1xf32>
    %cst_4 = arith.constant dense<0.000000e+00> : vector<16xf32>
    %8 = vector.multi_reduction <add>, %1, %cst_4 [1] : vector<16x256xf32> to vector<16xf32>
    %9 = vector.shape_cast %8 : vector<16xf32> to vector<16x1xf32>
    %cst_5 = arith.constant 2.560000e+02 : f32
    %10 = vector.broadcast %cst_5 : f32 to vector<16x1xf32>
    %11 = arith.subf %10, %9 : vector<16x1xf32>
    %cst_6 = arith.constant 9.99999974E-6 : f32
    %12 = vector.broadcast %cst_6 : f32 to vector<16x1xf32>
    %13 = arith.addf %11, %12 : vector<16x1xf32>
    %14 = arith.divf %7, %13 : vector<16x1xf32>
    %cst_7 = arith.constant 9.99999974E-6 : f32
    %15 = vector.broadcast %cst_7 : f32 to vector<16x1xf32>
    %16 = arith.addf %9, %15 : vector<16x1xf32>
    %17 = arith.divf %4, %16 : vector<16x1xf32>
    %18 = arith.subf %14, %17 : vector<16x1xf32>
    %c0_8 = arith.constant 0 : index
    %c0_9 = arith.constant 0 : index
    %19 = vector.load %arg3[%c0_8, %c0_9] : memref<16x1xf32, #tpu.memory_space<vmem>>, vector<16x1xf32>
    tpu.vector_store %arg3[%c0_8, %c0_9], %18 {strides = array<i32>} : memref<16x1xf32, #tpu.memory_space<vmem>>, vector<16x1xf32>,
    return
  }
  func.func @transform_0(%arg0: i32) -> (i32, i32) {
    %c0_i32 = arith.constant 0 : i32
    %c0_i32_0 = arith.constant 0 : i32
    return %arg0, %c0_i32 : i32, i32
  }
  func.func @transform_1(%arg0: i32) -> (i32, i32) {
    %c0_i32 = arith.constant 0 : i32
    %c0_i32_0 = arith.constant 0 : i32
    return %arg0, %c0_i32 : i32, i32
  }
  func.func @transform_2(%arg0: i32) -> (i32, i32) {
    %c0_i32 = arith.constant 0 : i32
    %c0_i32_0 = arith.constant 0 : i32
    return %arg0, %c0_i32 : i32, i32
  }
}

</mosaic_0001>

<llo_original>
// kernel: tpu_custom_call.1
$region0: #{tpu_custom_call.1}
  #allocation0 [shape = 'u32[]', space=smem, size = 0x4, offset = 0x4, fixed_abs, tag = 'smem constant byte address 0x4 - core index']
  #allocation1 [shape = 'u32[72,128]{1,0:T(1,128)}', space=vmem, size = 0x9000, scoped, tag = 'internal scratch']
  %s0 = inlined_call_operand.hbm [shape: f32[16,256], index: 0, kind: input, shape index: {}]
  %s1 = inlined_call_operand.hbm [shape: f32[16,256], index: 1, kind: input, shape index: {}]
  %s2 = inlined_call_operand.vmem [shape: f32[16,1], index: 2, kind: output, shape index: {}]
  %s3 = sld [smem:[#allocation0]]
  $region26: #{tpu_custom_call.1} parent=0
    _
  %s5 = ssub.s32 1, %s3
  %s6 = scalar_select 0, %s5, %s3
  $region1: #{tpu_custom_call.1} parent=0
    #allocation2 [shape = 'u8[16384]{0}', space=vmem, size = 0x4000, scoped, tag = 'input window, operand 0, single buffered']
    #allocation3 [shape = 's32[1]{0}', space=sflag, size = 0x4, scoped, tag = 'scoped memory for tpu_custom_call.1']
    #allocation4 [shape = 'u8[16384]{0}', space=vmem, size = 0x4000, scoped, tag = 'input window, operand 1, single buffered']
    #allocation5 [shape = 's32[1]{0}', space=sflag, size = 0x4, scoped, tag = 'scoped memory for tpu_custom_call.1']
    %7 = vsyncpa [#allocation3], 0
    %8 = vsyncpa [#allocation5], 0
    // Predicated region
    $region2: #{tpu_custom_call.1} parent=1 // pred_check
      _
    $region3: #{tpu_custom_call.1} parent=1 // pred_check_branch
      %10 = sbr.rel (0) target = $region5
    $region4: #{tpu_custom_call.1} parent=1 // pred_region
      %12 = vsyncadd [#allocation3], 0
      %s13 = sshll.u32 %s0, 4
      %s14 = int_to_ptr.hbm [resolvable:$true] %s13
      %s15 = sshll.u32 [#allocation2], 4
      %s16 = int_to_ptr.vmem [resolvable:$true] %s15
      %21 = dma.hbm_to_vmem [thread:$0]  %s14, 512, %s16, [#allocation3], 256, 256, 16
    $region5: #{tpu_custom_call.1} parent=1 // pred_fallthru
      _
    // Predicated region
    $region6: #{tpu_custom_call.1} parent=1 // pred_check
      _
    $region7: #{tpu_custom_call.1} parent=1 // pred_check_branch
      %23 = sbr.rel (0) target = $region9
    $region8: #{tpu_custom_call.1} parent=1 // pred_region
      %25 = vsyncadd [#allocation5], 0
      %s26 = sshll.u32 %s1, 4
      %s27 = int_to_ptr.hbm [resolvable:$true] %s26
      %s28 = sshll.u32 [#allocation4], 4
      %s29 = int_to_ptr.vmem [resolvable:$true] %s28
      %34 = dma.hbm_to_vmem [thread:$0]  %s27, 512, %s29, [#allocation5], 256, 256, 16
    $region9: #{tpu_custom_call.1} parent=1 // pred_fallthru
      _
    // Predicated region
    $region10: #{tpu_custom_call.1} parent=1 // pred_check
      _
    $region11: #{tpu_custom_call.1} parent=1 // pred_check_branch
      %36 = sbr.rel (0) target = $region13
    $region12: #{tpu_custom_call.1} parent=1 // pred_region
      %38 = dma.done [#allocation3], 512
    $region13: #{tpu_custom_call.1} parent=1 // pred_fallthru
      _
    // Predicated region
    $region14: #{tpu_custom_call.1} parent=1 // pred_check
      _
    $region15: #{tpu_custom_call.1} parent=1 // pred_check_branch
      %40 = sbr.rel (0) target = $region17
    $region16: #{tpu_custom_call.1} parent=1 // pred_region
      %42 = dma.done [#allocation5], 512
    $region17: #{tpu_custom_call.1} parent=1 // pred_fallthru
      _
    %v43 = vld [vmem:[#allocation2] sm:$0xff]
    %v44 = vld [vmem:[#allocation2 + $0x8] sm:$0xff]
    %v45 = vld [vmem:[#allocation2 + $0x10] sm:$0xff]
    %v46 = vld [vmem:[#allocation2 + $0x18] sm:$0xff]
    %v47 = vld [vmem:[#allocation4] sm:$0xff]
    %v48 = vld [vmem:[#allocation4 + $0x8] sm:$0xff]
    %v49 = vld [vmem:[#allocation4 + $0x10] sm:$0xff]
    %v50 = vld [vmem:[#allocation4 + $0x18] sm:$0xff]
    %v51 = vmul.f32 %v43, %v47
    %v52 = vmul.f32 %v44, %v48
    %v53 = vmul.f32 %v45, %v49
    %v54 = vmul.f32 %v46, %v50
    %v55 = vadd.f32 %v51, %v52
    %56 = vadd.xlane.f32.xlu0 %v55
    %v57 = vpop.xlane.xlu0 %56
    %v58 = vadd.f32 %v53, %v54
    %59 = vadd.xlane.f32.xlu0 %v58
    %v60 = vpop.xlane.xlu0 %59
    %v61 = vsub.f32 %v43, %v51
    %v62 = vsub.f32 %v44, %v52
    %v63 = vsub.f32 %v45, %v53
    %v64 = vsub.f32 %v46, %v54
    %v65 = vadd.f32 %v61, %v62
    %66 = vadd.xlane.f32.xlu0 %v65
    %v67 = vpop.xlane.xlu0 %66
    %v68 = vadd.f32 %v63, %v64
    %69 = vadd.xlane.f32.xlu0 %v68
    %v70 = vpop.xlane.xlu0 %69
    %v71 = vadd.f32 %v47, %v48
    %72 = vadd.xlane.f32.xlu0 %v71
    %v73 = vpop.xlane.xlu0 %72
    %v74 = vadd.f32 %v49, %v50
    %75 = vadd.xlane.f32.xlu0 %v74
    %v76 = vpop.xlane.xlu0 %75
    %v77 = vsub.f32 256.0, %v73
    %v78 = vsub.f32 256.0, %v76
    %v79 = vadd.f32 %v77, 1e-05
    %v80 = vadd.f32 %v78, 1e-05
    %v81 = vrcp.pop %v79
    %v82 = vmul.f32 %v79, %v81
    %v83 = vsub.f32 1.0, %v82
    %v84 = vmul.f32 %v81, %v83
    %v85 = vadd.f32 %v81, %v84
    %vm86 = vweird.f32 %v79
    %vm87 = vweird.f32 %v81
    %vm88 = vmor %vm86, %vm87
    %v89 = vsel %vm88, %v81, %v85
    %v90 = vand.u32 2147483647, %v79
    %vm91 = vcmp.eq.f32.partialorder %v90, 8.507059e+37
    %v92 = vand.u32 %v79, 2147483648
    %v93 = vor.u32 1.1754944e-38, %v92
    %v94 = vsel %vm91, %v93, %v89
    %v95 = vmul.f32 %v67, %v94
    %v96 = vrcp.pop %v80
    %v97 = vmul.f32 %v80, %v96
    %v98 = vsub.f32 1.0, %v97
    %v99 = vmul.f32 %v96, %v98
    %v100 = vadd.f32 %v96, %v99
    %vm101 = vweird.f32 %v80
    %vm102 = vweird.f32 %v96
    %vm103 = vmor %vm101, %vm102
    %v104 = vsel %vm103, %v96, %v100
    %v105 = vand.u32 2147483647, %v80
    %vm106 = vcmp.eq.f32.partialorder %v105, 8.507059e+37
    %v107 = vand.u32 %v80, 2147483648
    %v108 = vor.u32 1.1754944e-38, %v107
    %v109 = vsel %vm106, %v108, %v104
    %v110 = vmul.f32 %v70, %v109
    %v111 = vadd.f32 %v73, 1e-05
    %v112 = vadd.f32 %v76, 1e-05
    %v113 = vrcp.pop %v111
    %v114 = vmul.f32 %v111, %v113
    %v115 = vsub.f32 1.0, %v114
    %v116 = vmul.f32 %v113, %v115
    %v117 = vadd.f32 %v113, %v116
    %vm118 = vweird.f32 %v111
    %vm119 = vweird.f32 %v113
    %vm120 = vmor %vm118, %vm119
    %v121 = vsel %vm120, %v113, %v117
    %v122 = vand.u32 2147483647, %v111
    %vm123 = vcmp.eq.f32.partialorder %v122, 8.507059e+37
    %v124 = vand.u32 %v111, 2147483648
    %v125 = vor.u32 1.1754944e-38, %v124
    %v126 = vsel %vm123, %v125, %v121
    %v127 = vmul.f32 %v57, %v126
    %v128 = vrcp.pop %v112
    %v129 = vmul.f32 %v112, %v128
    %v130 = vsub.f32 1.0, %v129
    %v131 = vmul.f32 %v128, %v130
    %v132 = vadd.f32 %v128, %v131
    %vm133 = vweird.f32 %v112
    %vm134 = vweird.f32 %v128
    %vm135 = vmor %vm133, %vm134
    %v136 = vsel %vm135, %v128, %v132
    %v137 = vand.u32 2147483647, %v112
    %vm138 = vcmp.eq.f32.partialorder %v137, 8.507059e+37
    %v139 = vand.u32 %v112, 2147483648
    %v140 = vor.u32 1.1754944e-38, %v139
    %v141 = vsel %vm138, %v140, %v136
    %v142 = vmul.f32 %v60, %v141
    %v143 = vsub.f32 %v95, %v127
    %v144 = vsub.f32 %v110, %v142
    %vm145 = vcmask 7168
    %146 = vst.msk [vmem:[%s2] sm:$0xff] %vm145, %v143
    %147 = vst.msk [vmem:[%s2 + $0x8] sm:$0xff] %vm145, %v144
    // Predicated region
    $region18: #{tpu_custom_call.1} parent=1 // pred_check
      _
    $region19: #{tpu_custom_call.1} parent=1 // pred_check_branch
      %149 = sbr.rel (0) target = $region21
    $region20: #{tpu_custom_call.1} parent=1 // pred_region
      _
    $region21: #{tpu_custom_call.1} parent=1 // pred_fallthru
      _
    // Predicated region
    $region22: #{tpu_custom_call.1} parent=1 // pred_check
      _
    $region23: #{tpu_custom_call.1} parent=1 // pred_check_branch
      %151 = sbr.rel (0) target = $region25
    $region24: #{tpu_custom_call.1} parent=1 // pred_region
      _
    $region25: #{tpu_custom_call.1} parent=1 // pred_fallthru
      _
    %152 = vsyncpa [#allocation3], 1
    %153 = vsyncpa [#allocation5], 1

</llo_original>
